<compile_context>
chip_gen: v5e
topology: v5e:2x2
jax: 0.10.0
libtpu: 0.0.40
codegen_flags: <defaults>
</compile_context>

<pallas_src>
import jax
import jax.numpy as jnp
from jax.experimental import pallas as pl
from jax.experimental.pallas import tpu as pltpu


def _round_up(v, m):
    return ((v + m - 1) // m) * m


def _add_pe_kernel(x_ref, sc_ref, o_ref):
    # x_ref / o_ref : (S_tile, D) slab of one batch element.
    # sc_ref        : (S_tile, 2) f32 table, sc[p, 0] = sin(p), sc[p, 1] = cos(p).
    x = x_ref[...]
    shape = x.shape
    d_idx = jax.lax.broadcasted_iota(jnp.int32, shape, dimension=1)
    even = (d_idx & 1) == 0
    sin_p = jnp.broadcast_to(sc_ref[:, 0:1], shape)
    cos_p = jnp.broadcast_to(sc_ref[:, 1:2], shape)
    pe = jnp.where(even, sin_p, cos_p)                      # (S_tile, D) f32
    o_ref[...] = (x.astype(jnp.float32) + pe).astype(o_ref.dtype)


def positional_encoding(x, max_len=5000):
    """x: (B, S, D) -> x + pe[:, :S, :]  (matches the PyTorch module's forward)."""
    B, S, D = x.shape
    if S > max_len:
        # The PyTorch module's pe buffer only has max_len rows; mirror that limit.
        raise ValueError(f"sequence length {S} exceeds max_len={max_len}")

    # Torch promotes x + f32-buffer; keep the same result dtype.
    out_dtype = jnp.promote_types(x.dtype, jnp.float32)

    # Tiny per-position table (div_term == [1.0] -> angle == position).
    pos = jnp.arange(S, dtype=jnp.float32)
    sc = jnp.stack([jnp.sin(pos), jnp.cos(pos)], axis=-1)   # (S, 2) f32

    in_itemsize = jnp.dtype(x.dtype).itemsize
    out_itemsize = jnp.dtype(out_dtype).itemsize
    itemsize = max(in_itemsize, out_itemsize)

    # Row budget: ~2 MiB per x/out buffer -> with default double buffering this stays
    # well inside the scoped-VMEM defaults on v5e/v6e/v7x.
    budget_bytes = 2 * 1024 * 1024
    rows_budget = max(8, (budget_bytes // max(1, D * itemsize)) // 8 * 8)

    # Make sure the grid has enough steps to feed both v7x TensorCores / amortize
    # pipeline ramp even for small batch sizes.
    min_steps = 8
    tiles_wanted = -(-min_steps // B)                        # ceil(min_steps / B)
    rows_for_split = max(8, _round_up(-(-S // tiles_wanted), 8))

    s_tile = min(rows_budget, rows_for_split)
    if s_tile >= S:
        s_tile = S                                           # full extent (any size OK)
    # else: s_tile is a multiple of 8; trailing partial tile handled by Pallas masking.

    num_s_tiles = pl.cdiv(S, s_tile)
    grid = (num_s_tiles, B)                                  # batch innermost

    out = pl.pallas_call(
        _add_pe_kernel,
        out_shape=jax.ShapeDtypeStruct((B, S, D), out_dtype),
        grid=grid,
        in_specs=[
            # Leading size-1 batch dim squeezed out -> kernel sees 2-D (s_tile, D).
            pl.BlockSpec((None, s_tile, D), lambda t, b: (b, t, 0)),
            # sin/cos table: block index independent of b -> not re-DMA'd per batch.
            pl.BlockSpec((s_tile, 2), lambda t, b: (t, 0)),
        ],
        out_specs=pl.BlockSpec((None, s_tile, D), lambda t, b: (b, t, 0)),
        compiler_params=pltpu.CompilerParams(
            dimension_semantics=("parallel", "parallel")),
        cost_estimate=pl.CostEstimate(
            flops=3 * B * S * D,                             # add + parity compare/select
            transcendentals=0,
            bytes_accessed=B * S * D * (in_itemsize + out_itemsize) + S * 2 * 4),
    )(x, sc)
    return out


def positional_encoding_ref(x, max_len=5000):
    """Pure-JAX reference matching the PyTorch module exactly."""
    B, S, D = x.shape
    position = jnp.arange(0, max_len, dtype=jnp.float32)[:, None]
    div_term = jnp.exp(jnp.arange(0, D, D).astype(jnp.float32)
                       * (-jnp.log(10000.0) / D))
    pe = jnp.zeros((max_len, D), dtype=jnp.float32)
    pe = pe.at[:, 0::2].set(jnp.sin(position * div_term))
    pe = pe.at[:, 1::2].set(jnp.cos(position * div_term))
    return x + pe[None, :S, :]


if __name__ == "__main__":
    key = jax.random.PRNGKey(0)

    # 1) Primary small test (batch, seq, d_model as the module expects).
    B, S, D = 2, 8, 32
    x = jax.random.normal(key, (B, S, D), dtype=jnp.float32)
    out = jax.block_until_ready(positional_encoding(x))
    ref = positional_encoding_ref(x)
    assert out.shape == ref.shape and out.dtype == ref.dtype
    assert jnp.allclose(out, ref, atol=1e-5, rtol=1e-5), "mismatch vs reference"

    # 2) Odd seq length and odd d_model (full-extent blocks, parity select on odd D).
    B2, S2, D2 = 2, 7, 21
    x2 = jax.random.normal(jax.random.PRNGKey(1), (B2, S2, D2), dtype=jnp.float32)
    out2 = jax.block_until_ready(positional_encoding(x2))
    ref2 = positional_encoding_ref(x2)
    assert jnp.allclose(out2, ref2, atol=1e-5, rtol=1e-5), "mismatch (odd S/D path)"

    # 3) Larger S with B=1: exercises the multi-tile grid and the trailing
    #    partial row-tile (S not a multiple of the tile size) handled by masking.
    B3, S3, D3 = 1, 300, 64
    x3 = jax.random.normal(jax.random.PRNGKey(2), (B3, S3, D3), dtype=jnp.float32)
    out3 = jax.block_until_ready(positional_encoding(x3))
    ref3 = positional_encoding_ref(x3)
    assert jnp.allclose(out3, ref3, atol=1e-5, rtol=1e-5), "mismatch (partial-tile path)"

    print("KERNEL_OK")
</pallas_src>

<mosaic_0001>
module attributes {stable_mosaic.version = 11 : i64} {
  func.func @_add_pe_kernel(%arg0: i32, %arg1: i32, %arg2: memref<1x8x32xf32, #tpu.memory_space<vmem>>, %arg3: memref<8x2xf32, #tpu.memory_space<vmem>>, %arg4: memref<1x8x32xf32, #tpu.memory_space<vmem>>) attributes {dimension_semantics = [#tpu.dimension_semantics<parallel>, #tpu.dimension_semantics<parallel>], iteration_bounds = array<i64: 1, 2>, scalar_prefetch = 0 : i64, scratch_operands = 0 : i64, tpu.core_type = #tpu.core_type<tc>, window_params = [{transform_indices = @transform_0, window_bounds = array<i64: 1, 8, 32>}, {transform_indices = @transform_1, window_bounds = array<i64: 8, 2>}, {transform_indices = @transform_2, window_bounds = array<i64: 1, 8, 32>}]} {
    %c0 = arith.constant 0 : index
    %c0_0 = arith.constant 0 : index
    %c0_1 = arith.constant 0 : index
    %0 = vector.load %arg2[%c0, %c0_0, %c0_1] : memref<1x8x32xf32, #tpu.memory_space<vmem>>, vector<1x8x32xf32>
    %1 = vector.shape_cast %0 : vector<1x8x32xf32> to vector<8x32xf32>
    %2 = tpu.iota {dimensions = array<i32: 1>} : vector<8x32xi32>
    %c1_i32 = arith.constant 1 : i32
    %3 = vector.broadcast %c1_i32 : i32 to vector<8x32xi32>
    %4 = arith.andi %2, %3 : vector<8x32xi32>
    %c0_i32 = arith.constant 0 : i32
    %5 = vector.broadcast %c0_i32 : i32 to vector<8x32xi32>
    %6 = arith.cmpi eq, %4, %5 : vector<8x32xi32>
    %c0_2 = arith.constant 0 : index
    %c0_3 = arith.constant 0 : index
    %7 = vector.load %arg3[%c0_2, %c0_3] : memref<8x2xf32, #tpu.memory_space<vmem>>, vector<8x1xf32>
    %8 = vector.shape_cast %7 : vector<8x1xf32> to vector<8x1xf32>
    %9 = vector.broadcast %8 : vector<8x1xf32> to vector<8x32xf32>
    %c0_4 = arith.constant 0 : index
    %c1 = arith.constant 1 : index
    %10 = vector.load %arg3[%c0_4, %c1] : memref<8x2xf32, #tpu.memory_space<vmem>>, vector<8x1xf32>
    %11 = vector.shape_cast %10 : vector<8x1xf32> to vector<8x1xf32>
    %12 = vector.broadcast %11 : vector<8x1xf32> to vector<8x32xf32>
    %13 = arith.select %6, %9, %12 : vector<8x32xi1>, vector<8x32xf32>
    %14 = arith.addf %1, %13 : vector<8x32xf32>
    %c0_5 = arith.constant 0 : index
    %c0_6 = arith.constant 0 : index
    %c0_7 = arith.constant 0 : index
    %15 = vector.load %arg4[%c0_5, %c0_6, %c0_7] : memref<1x8x32xf32, #tpu.memory_space<vmem>>, vector<1x8x32xf32>
    %16 = vector.shape_cast %15 : vector<1x8x32xf32> to vector<8x32xf32>
    %17 = vector.shape_cast %14 : vector<8x32xf32> to vector<1x8x32xf32>
    tpu.vector_store %arg4[%c0_5, %c0_6, %c0_7], %17 {strides = array<i32>} : memref<1x8x32xf32, #tpu.memory_space<vmem>>, vector<1x8x32xf32>,
    return
  }
  func.func @transform_0(%arg0: i32, %arg1: i32) -> (i32, i32, i32) {
    %c0_i32 = arith.constant 0 : i32
    %c0_i32_0 = arith.constant 0 : i32
    return %arg1, %arg0, %c0_i32 : i32, i32, i32
  }
  func.func @transform_1(%arg0: i32, %arg1: i32) -> (i32, i32) {
    %c0_i32 = arith.constant 0 : i32
    %c0_i32_0 = arith.constant 0 : i32
    return %arg0, %c0_i32 : i32, i32
  }
  func.func @transform_2(%arg0: i32, %arg1: i32) -> (i32, i32, i32) {
    %c0_i32 = arith.constant 0 : i32
    %c0_i32_0 = arith.constant 0 : i32
    return %arg1, %arg0, %c0_i32 : i32, i32, i32
  }
}

</mosaic_0001>

<llo_original>
// kernel: tpu_custom_call.1
$region0: #{tpu_custom_call.1}
  #allocation0 [shape = 'u32[]', space=smem, size = 0x4, offset = 0x4, fixed_abs, tag = 'smem constant byte address 0x4 - core index']
  #allocation1 [shape = 'u32[72,128]{1,0:T(1,128)}', space=vmem, size = 0x9000, scoped, tag = 'internal scratch']
  %s0 = inlined_call_operand.hbm [shape: f32[2,8,32], index: 0, kind: input, shape index: {}]
  %s1 = inlined_call_operand.vmem [shape: f32[8,2], index: 1, kind: input, shape index: {}]
  %s2 = inlined_call_operand.hbm [shape: f32[2,8,32], index: 2, kind: output, shape index: {}]
  %s3 = sld [smem:[#allocation0]]
  $region45: #{tpu_custom_call.1} parent=0
    _
  %s5 = ssub.s32 1, %s3
  %s6 = scalar_select 0, %s5, %s3
  $region1: #{tpu_custom_call.1} parent=0
    #allocation2 [shape = 'u8[8192]{0}', space=vmem, size = 0x2000, scoped, tag = 'input window, operand 0']
    #allocation3 [shape = 's32[2]{0}', space=sflag, size = 0x8, scoped, tag = 'scoped memory for tpu_custom_call.1']
    #allocation4 [shape = 's32[2]{0}', space=sflag, size = 0x8, scoped, tag = 'scoped memory for tpu_custom_call.1']
    #allocation5 [shape = 'u8[8192]{0}', space=vmem, size = 0x2000, scoped, tag = 'output window, operand 0']
    %7 = vsyncpa [#allocation3], 0
    %s8 = scalar_lea.sflag [#allocation3], 1
    %9 = vsyncpa %s8, 0
    %10 = vsyncpa [#allocation4], 0
    %s11 = scalar_lea.sflag [#allocation4], 1
    %12 = vsyncpa %s11, 0
    loop: start=0, step=1, limit=4
    $region2: #{tpu_custom_call.1} parent=1 // loop_pre_header
      _
    $region3: #{tpu_custom_call.1} parent=1 // loop_header
      %s14 = sphi 0, %s18
      %p15 = scmp.ge.s32.totalorder %s14, 4
      %s21 = sphi 0, %s33
      %s22 = sphi 0, %s29
      %s23 = sphi 0, %s21
      %s24 = sphi 0, %s22
      %s25 = sphi 0, %s23
      %s26 = sphi 0, %s24
      %s38 = sphi 0, %s40
      %s41 = sphi 0, %s38
      %s42 = sphi 0, %s41
      %s58 = sphi 0, %s42
      %s64 = sphi 0, %s66
      %s67 = sphi 0, %s64
      %s68 = sphi 0, %s67
      %s84 = sphi 0, %s68
      %s92 = sphi 0, %s94
      %s95 = sphi 0, %s92
      %s96 = sphi 0, %s95
      %s112 = sphi 0, %s96
    $region4: #{tpu_custom_call.1} parent=1 // loop_header_branch
      %17 = sbr.rel (%p15) target = $region8
    $region5: #{tpu_custom_call.1} parent=1 // loop_body
      %s19 = ssub.s32 %s14, 1
      %s20 = ssub.s32 %s14, 2
      %s27 = sadd.s32 1, %s22
      %p28 = scmp.ge.s32.totalorder %s27, 2
      %s29 = scalar_select %p28, 0, %s27
      %s30 = sadd.s32 1, %s21
      %s31 = scalar_select %p28, %s30, %s21
      %p32 = scmp.ge.s32.totalorder %s31, 1
      %s33 = scalar_select %p32, 0, %s31
      %s34 = ssub.s32 %s22, %s29
      %s35 = ssub.s32 %s21, %s33
      %s36 = sor.u32 %s34, %s35
      %p37 = scmp.eq.s32.totalorder %s36, 0
      %s39 = sadd.s32 %s38, 1
      %s40 = scalar_select %p37, %s38, %s39
      %p43 = pneg %p37
      %p44 = scmp.eq.s32.totalorder %s14, 1
      %p45 = por %p43, %p44
      %p46 = scmp.ne.s32.totalorder %s38, %s41
      %p47 = scmp.eq.s32.totalorder %s14, 0
      %p48 = por %p46, %p47
      %p49 = scmp.ne.s32.totalorder %s38, %s41
      %p50 = scmp.eq.s32.totalorder %s19, 1
      %p51 = por %p49, %p50
      %p52 = scmp.ne.s32.totalorder %s41, %s42
      %p53 = scmp.eq.s32.totalorder %s19, 0
      %p54 = por %p52, %p53
      %p55 = scmp.ne.s32.totalorder %s41, %s42
      %p56 = scmp.eq.s32.totalorder %s20, 1
      %p57 = por %p55, %p56
      %p59 = scmp.ne.s32.totalorder %s42, %s58
      %p60 = scmp.eq.s32.totalorder %s20, 0
      %p61 = por %p59, %p60
      %s62 = ssub.s32 %s21, %s33
      %p63 = scmp.eq.s32.totalorder %s62, 0
      %s65 = sadd.s32 %s64, 1
      %s66 = scalar_select %p63, %s64, %s65
      %p69 = pneg %p63
      %p70 = scmp.eq.s32.totalorder %s14, 1
      %p71 = por %p69, %p70
      %p72 = scmp.ne.s32.totalorder %s64, %s67
      %p73 = scmp.eq.s32.totalorder %s14, 0
      %p74 = por %p72, %p73
      %p75 = scmp.ne.s32.totalorder %s64, %s67
      %p76 = scmp.eq.s32.totalorder %s19, 1
      %p77 = por %p75, %p76
      %p78 = scmp.ne.s32.totalorder %s67, %s68
      %p79 = scmp.eq.s32.totalorder %s19, 0
      %p80 = por %p78, %p79
      %p81 = scmp.ne.s32.totalorder %s67, %s68
      %p82 = scmp.eq.s32.totalorder %s20, 1
      %p83 = por %p81, %p82
      %p85 = scmp.ne.s32.totalorder %s68, %s84
      %p86 = scmp.eq.s32.totalorder %s20, 0
      %p87 = por %p85, %p86
      %s88 = ssub.s32 %s22, %s29
      %s89 = ssub.s32 %s21, %s33
      %s90 = sor.u32 %s88, %s89
      %p91 = scmp.eq.s32.totalorder %s90, 0
      %s93 = sadd.s32 %s92, 1
      %s94 = scalar_select %p91, %s92, %s93
      %p97 = pneg %p91
      %p98 = scmp.eq.s32.totalorder %s14, 1
      %p99 = por %p97, %p98
      %p100 = scmp.ne.s32.totalorder %s92, %s95
      %p101 = scmp.eq.s32.totalorder %s14, 0
      %p102 = por %p100, %p101
      %p103 = scmp.ne.s32.totalorder %s92, %s95
      %p104 = scmp.eq.s32.totalorder %s19, 1
      %p105 = por %p103, %p104
      %p106 = scmp.ne.s32.totalorder %s95, %s96
      %p107 = scmp.eq.s32.totalorder %s19, 0
      %p108 = por %p106, %p107
      %p109 = scmp.ne.s32.totalorder %s95, %s96
      %p110 = scmp.eq.s32.totalorder %s20, 1
      %p111 = por %p109, %p110
      %p113 = scmp.ne.s32.totalorder %s96, %s112
      %p114 = scmp.eq.s32.totalorder %s20, 0
      %p115 = por %p113, %p114
      %p116 = scmp.le.s32.totalorder 1, %s14
      %p117 = scmp.lt.s32.totalorder %s14, 3
      %p118 = pnand %p116, %p117
      %p119 = pneg %p118
      // Predicated region
      $region9: #{tpu_custom_call.1} parent=5 // pred_check
        _
      $region10: #{tpu_custom_call.1} parent=5 // pred_check_branch
        %121 = sbr.rel (%p118) target = $region12
      $region11: #{tpu_custom_call.1} parent=5 // pred_region
        %s122 = ssub.s32 %s14, 1
        // Predicated region
        $region13: #{tpu_custom_call.1} parent=11 // pred_check
          %p123 = pneg %p80
        $region14: #{tpu_custom_call.1} parent=11 // pred_check_branch
          %125 = sbr.rel (%p123) target = $region16
        $region15: #{tpu_custom_call.1} parent=11 // pred_region
          %p126 = scmp.lt.s32.totalorder %s23, 0
          %s127 = scalar_select %p126, %s23, 0
          %s128 = smul.addr %s127, 8
          %s129 = scalar_lea.vmem %s1, %s128
        $region16: #{tpu_custom_call.1} parent=11 // pred_fallthru
          _
      $region12: #{tpu_custom_call.1} parent=5 // pred_fallthru
        _
      %p130 = scmp.lt.s32.totalorder %s14, 2
      // Predicated region
      $region17: #{tpu_custom_call.1} parent=5 // pred_check
        %p131 = pneg %p130
      $region18: #{tpu_custom_call.1} parent=5 // pred_check_branch
        %133 = sbr.rel (%p131) target = $region20
      $region19: #{tpu_custom_call.1} parent=5 // pred_region
        // Predicated region
        $region21: #{tpu_custom_call.1} parent=19 // pred_check
          %p134 = pneg %p48
        $region22: #{tpu_custom_call.1} parent=19 // pred_check_branch
          %136 = sbr.rel (%p134) target = $region24
        $region23: #{tpu_custom_call.1} parent=19 // pred_region
          %s137 = sand.u32 %s38, 1
          %s138 = scalar_lea.sflag [#allocation3], %s137
          %s139 = sand.u32 %s38, 1
          %s140 = smul.addr %s139, 8
          %s141 = scalar_lea.vmem [#allocation2], %s140
          %143 = vsyncadd %s138, 0
          %s144 = sadd.s32 %s21, %s22
          %s145 = smul.addr %s144, 8
          %s146 = scalar_lea.hbm %s0, %s145
          %s148 = sshll.u32 %s146, 4
          %s149 = int_to_ptr.hbm [resolvable:$true] %s148
          %s150 = sshll.u32 %s141, 4
          %s151 = int_to_ptr.vmem [resolvable:$true] %s150
          %153 = dma.hbm_to_vmem [thread:$0]  %s149, 128, %s151, %s138
        $region24: #{tpu_custom_call.1} parent=19 // pred_fallthru
          _
      $region20: #{tpu_custom_call.1} parent=5 // pred_fallthru
        _
      %p154 = scmp.le.s32.totalorder 1, %s14
      %p155 = scmp.lt.s32.totalorder %s14, 3
      %p156 = pnand %p154, %p155
      %p157 = pneg %p156
      // Predicated region
      $region25: #{tpu_custom_call.1} parent=5 // pred_check
        _
      $region26: #{tpu_custom_call.1} parent=5 // pred_check_branch
        %159 = sbr.rel (%p156) target = $region28
      $region27: #{tpu_custom_call.1} parent=5 // pred_region
        %s160 = ssub.s32 %s14, 1
        %s161 = sand.u32 %s41, 1
        %s162 = scalar_lea.sflag [#allocation3], %s161
        %s163 = sand.u32 %s41, 1
        %s164 = smul.addr %s163, 8
        %s165 = scalar_lea.vmem [#allocation2], %s164
        // Predicated region
        $region29: #{tpu_custom_call.1} parent=27 // pred_check
          %p166 = pneg %p54
        $region30: #{tpu_custom_call.1} parent=27 // pred_check_branch
          %168 = sbr.rel (%p166) target = $region32
        $region31: #{tpu_custom_call.1} parent=27 // pred_region
          %170 = dma.done %s162, 128
        $region32: #{tpu_custom_call.1} parent=27 // pred_fallthru
          _
        %s171 = sand.u32 %s41, 1
        %s172 = scalar_lea.sflag [#allocation3], %s171
        %s173 = sand.u32 %s41, 1
        %s174 = smul.addr %s173, 8
        %s175 = scalar_lea.vmem [#allocation2], %s174
        %p176 = pneg %p54
        %p177 = pneg %p51
        %p178 = scmp.lt.s32.totalorder %s23, 0
        %s179 = scalar_select %p178, %s23, 0
        %s180 = smul.addr %s179, 8
        %s181 = scalar_lea.vmem %s1, %s180
        %p182 = pneg %p80
        %p183 = pneg %p77
        %p184 = pneg %p108
        %p185 = pneg %p105
        %s186 = sand.u32 %s95, 1
        %s187 = scalar_lea.sflag [#allocation4], %s186
        %s188 = sand.u32 %s95, 1
        %s189 = smul.addr %s188, 8
        %s190 = scalar_lea.vmem [#allocation5], %s189
        %p191 = scmp.lt.s32.totalorder %s23, 0
        %s192 = scalar_select %p191, %s23, 0
        %s193 = smul.addr %s192, 8
        %s194 = scalar_lea.vmem %s1, %s193
        %v195 = vld [vmem:[%s165] sm:$0xff]
        %v196 = vlaneseq
        %v197 = vand.u32 %v196, 127
        %v198 = vand.u32 %v197, 1
        %vm199 = vcmp.eq.s32.totalorder %v198, 0
        %v200 = vld [vmem:[%s194] sm:$0xff]
        %202 = vset.pattern.permute.xlu0 0
        %203 = vperm.xlu0 %202, %v200
        %v204 = vpop.permute.xlu0 %203
        %206 = vset.pattern.permute.xlu0 1
        %207 = vperm.xlu0 %206, %v200
        %v208 = vpop.permute.xlu0 %207
        %v210 = vsel %vm199, %v204, %v208
        %v211 = vadd.f32 %v195, %v210
        %vm212 = vcmask 261120
        %213 = vst.msk [vmem:[%s190] sm:$0xff] %vm212, %v211
        %s214 = sand.u32 %s95, 1
        %s215 = scalar_lea.sflag [#allocation4], %s214
        %s216 = sand.u32 %s95, 1
        %s217 = smul.addr %s216, 8
        %s218 = scalar_lea.vmem [#allocation5], %s217
        // Predicated region
        $region33: #{tpu_custom_call.1} parent=27 // pred_check
          %p219 = pneg %p105
        $region34: #{tpu_custom_call.1} parent=27 // pred_check_branch
          %221 = sbr.rel (%p219) target = $region36
        $region35: #{tpu_custom_call.1} parent=27 // pred_region
          %223 = vsyncadd %s215, 0
          %s224 = sadd.s32 %s23, %s24
          %s225 = smul.addr %s224, 8
          %s226 = scalar_lea.hbm %s2, %s225
          %s228 = sshll.u32 %s218, 4
          %s229 = int_to_ptr.vmem [resolvable:$true] %s228
          %s230 = sshll.u32 %s226, 4
          %s231 = int_to_ptr.hbm [resolvable:$true] %s230
          %233 = dma.vmem_to_hbm [thread:$0]  %s229, 128, %s231, %s215
        $region36: #{tpu_custom_call.1} parent=27 // pred_fallthru
          _
      $region28: #{tpu_custom_call.1} parent=5 // pred_fallthru
        _
      %p234 = scmp.le.s32.totalorder 2, %s14
      // Predicated region
      $region37: #{tpu_custom_call.1} parent=5 // pred_check
        %p235 = pneg %p234
      $region38: #{tpu_custom_call.1} parent=5 // pred_check_branch
        %237 = sbr.rel (%p235) target = $region40
      $region39: #{tpu_custom_call.1} parent=5 // pred_region
        %s238 = ssub.s32 %s14, 2
        // Predicated region
        $region41: #{tpu_custom_call.1} parent=39 // pred_check
          %p239 = pneg %p111
        $region42: #{tpu_custom_call.1} parent=39 // pred_check_branch
          %241 = sbr.rel (%p239) target = $region44
        $region43: #{tpu_custom_call.1} parent=39 // pred_region
          %s242 = sand.u32 %s96, 1
          %s243 = scalar_lea.sflag [#allocation4], %s242
          %s244 = sand.u32 %s96, 1
          %s245 = smul.addr %s244, 8
          %s246 = scalar_lea.vmem [#allocation5], %s245
          %248 = dma.done %s243, 128
        $region44: #{tpu_custom_call.1} parent=39 // pred_fallthru
          _
      $region40: #{tpu_custom_call.1} parent=5 // pred_fallthru
        _
    $region6: #{tpu_custom_call.1} parent=1 // loop_footer
      %s18 = sadd.s32 1, %s14
    $region7: #{tpu_custom_call.1} parent=1 // loop_footer_branch
      %13 = sbr.rel target = $region3
    $region8: #{tpu_custom_call.1} parent=1 // loop_exit
      _
    %249 = vsyncpa [#allocation3], 1
    %s250 = scalar_lea.sflag [#allocation3], 1
    %251 = vsyncpa %s250, 1
    %252 = vsyncpa [#allocation4], 1
    %s253 = scalar_lea.sflag [#allocation4], 1
    %254 = vsyncpa %s253, 1

</llo_original>
